<compile_context>
chip_gen: v7x
topology: tpu7x:2x2x1
jax: 0.10.0
libtpu: 0.0.40
codegen_flags: <defaults>
</compile_context>

<pallas_src>
import functools

import jax
import jax.numpy as jnp
from jax.experimental import pallas as pl
from jax.experimental.pallas import tpu as pltpu

LANE = 128  # TPU vreg lane width; one gate per 128-lane slab, one 128-lane output block


# --------------------------------------------------------------------------------------
# Kernel
# --------------------------------------------------------------------------------------
def gru_readout_kernel(x_ref, wg_ref, bg_ref, bhn_ref, wro_ref, bro_ref, out_ref,
                       *, hidden, out_dim):
    """One GRU step (h0 == 0) + linear readout + 2-way softmax, single 128-lane output.

    x_ref   : (bm, K)        [stimulus | reward] rows (K = S+1)
    wg_ref  : (K, 3*128)     input gate weights [r | z | n], 128 lanes per gate
    bg_ref  : (1, 3*128)     gate biases (b_ih+b_hh for r/z, b_ih for n)
    bhn_ref : (1, 128)       b_hh_n (applied inside the r gate)
    wro_ref : (128, 128)     readout weights: lin cols @ lanes H..H+O-1, diff cols @ H+O..
    bro_ref : (1, 128)       readout biases, same lane layout, zeros elsewhere
    out_ref : (bm, 128)      [ h_new (0..H-1) | linear (H..H+O-1) | prob (H+O..H+2O-1) | 0 ]
    """
    # Input-side gate pre-activations: one small MXU matmul (K x 384).
    gi = (jnp.dot(x_ref[...], wg_ref[...], preferred_element_type=jnp.float32)
          + bg_ref[...])                                             # (bm, 384)

    # Lane-aligned gate views (PyTorch gate order r, z, n); sigmoid/tanh go to the EUP.
    r = jax.nn.sigmoid(gi[:, 0:LANE])
    z = jax.nn.sigmoid(gi[:, LANE:2 * LANE])
    n = jnp.tanh(gi[:, 2 * LANE:3 * LANE] + r * bhn_ref[...])
    h_new = (1.0 - z) * n                      # h' = (1-z)*n + z*h  with h == 0
    # padding lanes (>= H): gi==0, bhn==0 -> n==0 -> h_new padding lanes are exactly 0.

    # Readout: one (128,128) MXU pass yields both the logits (lin lanes) and the
    # logit differences (diff lanes); all other lanes are exactly 0.
    ro = (jnp.dot(h_new, wro_ref[...], preferred_element_type=jnp.float32)
          + bro_ref[...])                                            # (bm, 128)
    sig = jax.nn.sigmoid(ro)                   # diff lanes == softmax probabilities

    # Merge into one lane-dense output vreg:
    #   h_new + ro is already correct in the h lanes (ro==0 there), the lin lanes
    #   (h_new==0 there) and the dead lanes (both 0); only the prob lanes need the
    #   sigmoid values substituted in.
    lanes = jax.lax.broadcasted_iota(jnp.int32, (1, LANE), 1)
    prob_lane = (lanes >= hidden + out_dim) & (lanes < hidden + 2 * out_dim)
    out_ref[...] = jnp.where(prob_lane, sig, h_new + ro)


# --------------------------------------------------------------------------------------
# Host-side parameter packing (PyTorch layout -> lane-aligned kernel operands)
# --------------------------------------------------------------------------------------
def _pad_lanes(m, width=LANE):
    """Zero-pad the last dim of a 2-D array up to `width` lanes."""
    return jnp.pad(m, ((0, 0), (0, width - m.shape[1])))


def pack_params(params, hidden, out_dim):
    """Pack PyTorch-layout GRU + Linear params into lane-aligned kernel operands."""
    w_ih, b_ih = params['w_ih'].astype(jnp.float32), params['b_ih'].astype(jnp.float32)
    b_hh = params['b_hh'].astype(jnp.float32)
    w_ro, b_ro = params['w_ro'].astype(jnp.float32), params['b_ro'].astype(jnp.float32)
    H, O = hidden, out_dim

    def gate(a, g):                                   # rows of gate g (r=0, z=1, n=2)
        return a[g * H:(g + 1) * H]

    # Input gate weights (stimulus AND reward columns, K = S+1 rows), one 128-lane
    # block per gate: (K, 3*128).
    w_gates = jnp.concatenate(
        [_pad_lanes(gate(w_ih, g).T) for g in range(3)], axis=1)

    # Gate biases: h0 == 0 so the hidden path contributes only b_hh.
    #   r/z gates: b_ih + b_hh folded;  n gate: b_ih only (b_hh_n is gated by r in-kernel).
    b_r = gate(b_ih, 0) + gate(b_hh, 0)
    b_z = gate(b_ih, 1) + gate(b_hh, 1)
    b_n = gate(b_ih, 2)
    b_gates = jnp.concatenate(
        [_pad_lanes(b[None, :]) for b in (b_r, b_z, b_n)], axis=1)   # (1, 3*128)
    b_hh_n = _pad_lanes(gate(b_hh, 2)[None, :])                      # (1, 128)

    # Single (128, 128) readout block.
    #   lanes H..H+O-1   : linear columns  (w_j, b_j)
    #   lanes H+O..H+2O-1: difference cols (w_j - w_other, b_j - b_other)
    #     -> sigmoid of these lanes == softmax([l0, l1]) exactly (O == 2).
    w0, w1 = w_ro[0], w_ro[1]
    b0, b1 = b_ro[0], b_ro[1]
    w_ro128 = jnp.zeros((LANE, LANE), jnp.float32)
    w_ro128 = w_ro128.at[:H, H + 0].set(w0)
    w_ro128 = w_ro128.at[:H, H + 1].set(w1)
    w_ro128 = w_ro128.at[:H, H + O + 0].set(w0 - w1)
    w_ro128 = w_ro128.at[:H, H + O + 1].set(w1 - w0)
    b_ro128 = jnp.zeros((LANE,), jnp.float32)
    b_ro128 = b_ro128.at[H + 0].set(b0).at[H + 1].set(b1)
    b_ro128 = b_ro128.at[H + O + 0].set(b0 - b1).at[H + O + 1].set(b1 - b0)
    b_ro128 = b_ro128[None, :]                                       # (1, 128)

    return w_gates, b_gates, b_hh_n, w_ro128, b_ro128


def _choose_bm(B, cap=512):
    """Batch tile size.

    - multiple of 8 (sublane alignment),
    - large (up to `cap`) to amortize the ~0.35us per-grid-step overhead,
    - at least 2 grid steps whenever B >= 16 so v7x's two TensorCores both get work.
    The wrapper zero-pads B up to a multiple of bm, so no single-giant-block fallback.
    """
    if B <= 8:
        return 8
    if B < 16:
        return ((B + 7) // 8) * 8          # one small block; padding handles the rest
    half = (B + 1) // 2                    # guarantee grid >= 2
    bm = min(cap, ((half + 7) // 8) * 8)
    return max(8, bm)


# --------------------------------------------------------------------------------------
# Wrapper (module forward)
# --------------------------------------------------------------------------------------
def recurrent_model_forward(stimulus, reward, params):
    """stimulus: (B, 1, S); reward: (B, 1); params in PyTorch layout (gru, output_size=2)."""
    B, T, S = stimulus.shape
    assert T == 1, "module forward processes a single step"
    H = params['w_hh'].shape[1]
    O = params['w_ro'].shape[0]
    assert O == 2, "softmax branch of the module (output_size == 2)"
    assert H + 2 * O <= LANE, "packed single-block output requires H + 2*O <= 128"

    # Fold the reward concat into the stimulus operand: x = [stimulus | reward], K = S+1.
    x = jnp.concatenate([stimulus[:, 0, :].astype(jnp.float32),
                         reward.astype(jnp.float32)], axis=1)        # (B, K)
    K = S + 1

    w_gates, b_gates, b_hh_n, w_ro128, b_ro128 = pack_params(params, H, O)

    # Batch tiling: pad B to a multiple of bm, one "parallel" grid axis.
    bm = _choose_bm(B)
    B_pad = ((B + bm - 1) // bm) * bm
    if B_pad != B:
        x = jnp.pad(x, ((0, B_pad - B), (0, 0)))      # zero rows -> harmless, sliced off
    grid = (B_pad // bm,)

    row_spec = lambda shape: pl.BlockSpec(shape, lambda i: (i, 0))   # per-batch-block
    rep_spec = lambda shape: pl.BlockSpec(shape, lambda i: (0, 0))   # replicated weights

    kernel = functools.partial(gru_readout_kernel, hidden=H, out_dim=O)

    slab = pl.pallas_call(
        kernel,
        out_shape=jax.ShapeDtypeStruct((B_pad, LANE), jnp.float32),
        grid=grid,
        in_specs=[
            row_spec((bm, K)),                 # x = [stimulus | reward]
            rep_spec((K, 3 * LANE)),           # gate weights
            rep_spec((1, 3 * LANE)),           # gate biases
            rep_spec((1, LANE)),               # b_hh_n
            rep_spec((LANE, LANE)),            # readout weights (lin + diff cols)
            rep_spec((1, LANE)),               # readout biases
        ],
        out_specs=row_spec((bm, LANE)),
        compiler_params=pltpu.CompilerParams(dimension_semantics=("parallel",)),
    )(x, w_gates, b_gates, b_hh_n, w_ro128, b_ro128)

    core_out = slab[:B, 0:H]                   # h_new
    lin = slab[:B, H:H + O]                    # linear_output
    prob = slab[:B, H + O:H + 2 * O]           # prob_output

    return dict(
        core_output=core_out[:, None, :],      # (B, 1, H)
        core_hidden=core_out[:, None, :],      # h_n.transpose(0,1): identical for 1-layer/1-step GRU
        linear_output=lin[:, None, :],         # (B, 1, O)
        prob_output=prob[:, None, :],          # (B, 1, O)
    )


# --------------------------------------------------------------------------------------
# Deterministic init + plain-JAX reference (for correctness checks)
# --------------------------------------------------------------------------------------
def init_params(key, input_size, hidden_size, output_size):
    """Deterministic parameter init (uniform +/- 1/sqrt(H), PyTorch-style shapes)."""
    ks = jax.random.split(key, 6)
    k = 1.0 / jnp.sqrt(jnp.float32(hidden_size))
    u = lambda kk, shape: jax.random.uniform(kk, shape, jnp.float32, -k, k)
    return dict(
        w_ih=u(ks[0], (3 * hidden_size, input_size)),   # GRU weight_ih_l0
        w_hh=u(ks[1], (3 * hidden_size, hidden_size)),  # GRU weight_hh_l0 (unused: h0 == 0)
        b_ih=u(ks[2], (3 * hidden_size,)),
        b_hh=u(ks[3], (3 * hidden_size,)),
        w_ro=u(ks[4], (output_size, hidden_size)),      # readout Linear weight
        b_ro=u(ks[5], (output_size,)),
    )


def reference_forward(stimulus, reward, params):
    """Plain-JAX reference of the module forward pass (f32), PyTorch GRU semantics."""
    x = jnp.concatenate([stimulus, reward[:, :, None]], axis=2)[:, 0, :]   # (B, S+1)
    H = params['w_hh'].shape[1]
    gi = x @ params['w_ih'].T + params['b_ih']
    gh = params['b_hh']                                    # h0 == 0  ->  h @ W_hh == 0
    r = jax.nn.sigmoid(gi[:, :H] + gh[:H])
    z = jax.nn.sigmoid(gi[:, H:2 * H] + gh[H:2 * H])
    n = jnp.tanh(gi[:, 2 * H:] + r * gh[2 * H:])
    h = (1.0 - z) * n
    lin = h @ params['w_ro'].T + params['b_ro']
    prob = jax.nn.softmax(lin, axis=-1)
    return h, lin, prob


def _check(B, S, H, O, key):
    k_stim, k_rew, k_param = jax.random.split(key, 3)
    stimulus = jax.random.normal(k_stim, (B, 1, S), jnp.float32)
    reward = jax.random.normal(k_rew, (B, 1), jnp.float32)
    params = init_params(k_param, input_size=S + 1, hidden_size=H, output_size=O)

    out = recurrent_model_forward(stimulus, reward, params)
    jax.block_until_ready(out)

    assert out['core_output'].shape == (B, 1, H)
    assert out['core_hidden'].shape == (B, 1, H)
    assert out['linear_output'].shape == (B, 1, O)
    assert out['prob_output'].shape == (B, 1, O)

    h_ref, lin_ref, prob_ref = reference_forward(stimulus, reward, params)
    assert jnp.allclose(out['core_output'][:, 0, :], h_ref, atol=1e-5)
    assert jnp.allclose(out['linear_output'][:, 0, :], lin_ref, atol=1e-5)
    assert jnp.allclose(out['prob_output'][:, 0, :], prob_ref, atol=1e-5)
    assert jnp.allclose(jnp.sum(out['prob_output'], axis=-1), 1.0, atol=1e-5)


if __name__ == "__main__":
    # Small deterministic config: stimulus dim 3 (+1 reward) -> input_size 4,
    # hidden_size 32, output_size 2 (softmax branch of the module).
    key = jax.random.PRNGKey(0)
    k1, k2 = jax.random.split(key)
    _check(B=2, S=3, H=32, O=2, key=k1)    # tiny batch (padding path, grid=1)
    _check(B=20, S=3, H=32, O=2, key=k2)   # non-multiple batch, grid>=2 (padding + megacore path)
    print("KERNEL_OK")
</pallas_src>

<mosaic_0001>
module attributes {stable_mosaic.version = 11 : i64} {
  func.func @gru_readout_kernel(%arg0: i32, %arg1: memref<8x4xf32, #tpu.memory_space<vmem>>, %arg2: memref<4x384xf32, #tpu.memory_space<vmem>>, %arg3: memref<1x384xf32, #tpu.memory_space<vmem>>, %arg4: memref<1x128xf32, #tpu.memory_space<vmem>>, %arg5: memref<128x128xf32, #tpu.memory_space<vmem>>, %arg6: memref<1x128xf32, #tpu.memory_space<vmem>>, %arg7: memref<8x128xf32, #tpu.memory_space<vmem>>) attributes {dimension_semantics = [#tpu.dimension_semantics<parallel>], iteration_bounds = array<i64: 1>, scalar_prefetch = 0 : i64, scratch_operands = 0 : i64, tpu.core_type = #tpu.core_type<tc>, window_params = [{transform_indices = @transform_0, window_bounds = array<i64: 8, 4>}, {pipeline_mode = #tpu.pipeline_mode<synchronous>, transform_indices = @transform_1, window_bounds = array<i64: 4, 384>}, {pipeline_mode = #tpu.pipeline_mode<synchronous>, transform_indices = @transform_2, window_bounds = array<i64: 1, 384>}, {pipeline_mode = #tpu.pipeline_mode<synchronous>, transform_indices = @transform_3, window_bounds = array<i64: 1, 128>}, {pipeline_mode = #tpu.pipeline_mode<synchronous>, transform_indices = @transform_4, window_bounds = array<i64: 128, 128>}, {pipeline_mode = #tpu.pipeline_mode<synchronous>, transform_indices = @transform_5, window_bounds = array<i64: 1, 128>}, {transform_indices = @transform_6, window_bounds = array<i64: 8, 128>}]} {
    %c0 = arith.constant 0 : index
    %c0_0 = arith.constant 0 : index
    %0 = vector.load %arg1[%c0, %c0_0] : memref<8x4xf32, #tpu.memory_space<vmem>>, vector<8x4xf32>
    %c0_1 = arith.constant 0 : index
    %c0_2 = arith.constant 0 : index
    %1 = vector.load %arg2[%c0_1, %c0_2] : memref<4x384xf32, #tpu.memory_space<vmem>>, vector<4x384xf32>
    %cst = arith.constant dense<0.000000e+00> : vector<8x384xf32>
    %2 = tpu.matmul %0, %1, %cst {dimension_numbers = #tpu.dot_dimension_numbers<[1], [0], [0], [1], [0, 0, 1, 1], [], []>} : vector<8x4xf32>, vector<4x384xf32>, vector<8x384xf32> -> vector<8x384xf32>
    %c0_3 = arith.constant 0 : index
    %c0_4 = arith.constant 0 : index
    %3 = vector.load %arg3[%c0_3, %c0_4] : memref<1x384xf32, #tpu.memory_space<vmem>>, vector<1x384xf32>
    %4 = vector.broadcast %3 : vector<1x384xf32> to vector<8x384xf32>
    %5 = arith.addf %2, %4 : vector<8x384xf32>
    %6 = vector.extract_strided_slice %5 {offsets = [0, 0], sizes = [8, 128], strides = [1, 1]} : vector<8x384xf32> to vector<8x128xf32>
    %7 = arith.negf %6 : vector<8x128xf32>
    %8 = math.exp %7 : vector<8x128xf32>
    %cst_5 = arith.constant 1.000000e+00 : f32
    %9 = vector.broadcast %cst_5 : f32 to vector<8x128xf32>
    %10 = arith.addf %9, %8 : vector<8x128xf32>
    %11 = arith.divf %9, %10 : vector<8x128xf32>
    %12 = vector.extract_strided_slice %5 {offsets = [0, 128], sizes = [8, 128], strides = [1, 1]} : vector<8x384xf32> to vector<8x128xf32>
    %13 = arith.negf %12 : vector<8x128xf32>
    %14 = math.exp %13 : vector<8x128xf32>
    %cst_6 = arith.constant 1.000000e+00 : f32
    %15 = vector.broadcast %cst_6 : f32 to vector<8x128xf32>
    %16 = arith.addf %15, %14 : vector<8x128xf32>
    %17 = arith.divf %15, %16 : vector<8x128xf32>
    %18 = vector.extract_strided_slice %5 {offsets = [0, 256], sizes = [8, 128], strides = [1, 1]} : vector<8x384xf32> to vector<8x128xf32>
    %c0_7 = arith.constant 0 : index
    %c0_8 = arith.constant 0 : index
    %19 = vector.load %arg4[%c0_7, %c0_8] : memref<1x128xf32, #tpu.memory_space<vmem>>, vector<1x128xf32>
    %20 = vector.broadcast %19 : vector<1x128xf32> to vector<8x128xf32>
    %21 = arith.mulf %11, %20 : vector<8x128xf32>
    %22 = arith.addf %18, %21 : vector<8x128xf32>
    %23 = math.tanh %22 : vector<8x128xf32>
    %cst_9 = arith.constant 1.000000e+00 : f32
    %24 = vector.broadcast %cst_9 : f32 to vector<8x128xf32>
    %25 = arith.subf %24, %17 : vector<8x128xf32>
    %26 = arith.mulf %25, %23 : vector<8x128xf32>
    %c0_10 = arith.constant 0 : index
    %c0_11 = arith.constant 0 : index
    %27 = vector.load %arg5[%c0_10, %c0_11] : memref<128x128xf32, #tpu.memory_space<vmem>>, vector<128x128xf32>
    %cst_12 = arith.constant dense<0.000000e+00> : vector<8x128xf32>
    %28 = tpu.matmul %26, %27, %cst_12 {dimension_numbers = #tpu.dot_dimension_numbers<[1], [0], [0], [1], [0, 0, 1, 1], [], []>} : vector<8x128xf32>, vector<128x128xf32>, vector<8x128xf32> -> vector<8x128xf32>
    %c0_13 = arith.constant 0 : index
    %c0_14 = arith.constant 0 : index
    %29 = vector.load %arg6[%c0_13, %c0_14] : memref<1x128xf32, #tpu.memory_space<vmem>>, vector<1x128xf32>
    %30 = vector.broadcast %29 : vector<1x128xf32> to vector<8x128xf32>
    %31 = arith.addf %28, %30 : vector<8x128xf32>
    %32 = arith.negf %31 : vector<8x128xf32>
    %33 = math.exp %32 : vector<8x128xf32>
    %cst_15 = arith.constant 1.000000e+00 : f32
    %34 = vector.broadcast %cst_15 : f32 to vector<8x128xf32>
    %35 = arith.addf %34, %33 : vector<8x128xf32>
    %36 = arith.divf %34, %35 : vector<8x128xf32>
    %37 = tpu.iota {dimensions = array<i32: 1>} : vector<1x128xi32>
    %c34_i32 = arith.constant 34 : i32
    %38 = vector.broadcast %c34_i32 : i32 to vector<1x128xi32>
    %39 = arith.cmpi sge, %37, %38 : vector<1x128xi32>
    %c36_i32 = arith.constant 36 : i32
    %40 = vector.broadcast %c36_i32 : i32 to vector<1x128xi32>
    %41 = arith.cmpi slt, %37, %40 : vector<1x128xi32>
    %42 = arith.andi %39, %41 : vector<1x128xi1>
    %43 = arith.addf %26, %31 : vector<8x128xf32>
    %44 = vector.shape_cast %42 : vector<1x128xi1> to vector<1x128xi1>
    %45 = vector.broadcast %44 : vector<1x128xi1> to vector<8x128xi1>
    %46 = arith.select %45, %36, %43 : vector<8x128xi1>, vector<8x128xf32>
    %c0_16 = arith.constant 0 : index
    %c0_17 = arith.constant 0 : index
    %47 = vector.load %arg7[%c0_16, %c0_17] : memref<8x128xf32, #tpu.memory_space<vmem>>, vector<8x128xf32>
    tpu.vector_store %arg7[%c0_16, %c0_17], %46 {strides = array<i32>} : memref<8x128xf32, #tpu.memory_space<vmem>>, vector<8x128xf32>,
    return
  }
  func.func @transform_0(%arg0: i32) -> (i32, i32) {
    %c0_i32 = arith.constant 0 : i32
    %c0_i32_0 = arith.constant 0 : i32
    return %arg0, %c0_i32 : i32, i32
  }
  func.func @transform_1(%arg0: i32) -> (i32, i32) {
    %c0_i32 = arith.constant 0 : i32
    %c0_i32_0 = arith.constant 0 : i32
    %c0_i32_1 = arith.constant 0 : i32
    return %c0_i32, %c0_i32_0 : i32, i32
  }
  func.func @transform_2(%arg0: i32) -> (i32, i32) {
    %c0_i32 = arith.constant 0 : i32
    %c0_i32_0 = arith.constant 0 : i32
    %c0_i32_1 = arith.constant 0 : i32
    return %c0_i32, %c0_i32_0 : i32, i32
  }
  func.func @transform_3(%arg0: i32) -> (i32, i32) {
    %c0_i32 = arith.constant 0 : i32
    %c0_i32_0 = arith.constant 0 : i32
    %c0_i32_1 = arith.constant 0 : i32
    return %c0_i32, %c0_i32_0 : i32, i32
  }
  func.func @transform_4(%arg0: i32) -> (i32, i32) {
    %c0_i32 = arith.constant 0 : i32
    %c0_i32_0 = arith.constant 0 : i32
    %c0_i32_1 = arith.constant 0 : i32
    return %c0_i32, %c0_i32_0 : i32, i32
  }
  func.func @transform_5(%arg0: i32) -> (i32, i32) {
    %c0_i32 = arith.constant 0 : i32
    %c0_i32_0 = arith.constant 0 : i32
    %c0_i32_1 = arith.constant 0 : i32
    return %c0_i32, %c0_i32_0 : i32, i32
  }
  func.func @transform_6(%arg0: i32) -> (i32, i32) {
    %c0_i32 = arith.constant 0 : i32
    %c0_i32_0 = arith.constant 0 : i32
    return %arg0, %c0_i32 : i32, i32
  }
}

</mosaic_0001>

<llo_original>
// kernel: tpu_custom_call.1
$region0: #{tpu_custom_call.1}
  #allocation0 [shape = 'u32[]', space=smem, size = 0x4, offset = 0x4, fixed_abs, tag = 'smem constant byte address 0x4 - core index']
  #allocation1 [shape = 'u32[144,128]{1,0:T(1,128)}', space=vmem, size = 0x12000, scoped, tag = 'internal scratch']
  %s0 = inlined_call_operand.vmem [shape: f32[8,4], index: 0, kind: input, shape index: {}]
  %s1 = inlined_call_operand.vmem [shape: f32[4,384], index: 1, kind: input, shape index: {}]
  %s2 = inlined_call_operand.vmem [shape: f32[1,384], index: 2, kind: input, shape index: {}]
  %s3 = inlined_call_operand.vmem [shape: f32[1,128], index: 3, kind: input, shape index: {}]
  %s4 = inlined_call_operand.hbm [shape: f32[128,128], index: 4, kind: input, shape index: {}]
  %s5 = inlined_call_operand.vmem [shape: f32[1,128], index: 5, kind: input, shape index: {}]
  %s6 = inlined_call_operand.hbm [shape: f32[8,128], index: 6, kind: output, shape index: {}]
  %s7 = sld [smem:[#allocation0]]
  $region38: #{tpu_custom_call.1} parent=0
    _
  %s9 = ssub.s32 1, %s7
  %s10 = scalar_select 0, %s9, %s7
  $region1: #{tpu_custom_call.1} parent=0
    #allocation2 [shape = 'u8[65536]{0}', space=vmem, size = 0x10000, scoped, tag = 'input window, operand 4, single buffered']
    #allocation3 [shape = 's32[1]{0}', space=sflag, size = 0x4, scoped, tag = 'scoped memory for tpu_custom_call.1']
    #allocation4 [shape = 's32[1]{0}', space=sflag, size = 0x4, scoped, tag = 'scoped memory for tpu_custom_call.1']
    #allocation5 [shape = 'u8[4096]{0}', space=vmem, size = 0x1000, scoped, tag = 'output window, operand 0, single buffered']
    %11 = vsyncpa [#allocation3], 0
    %12 = vsyncpa [#allocation4], 0
    // Predicated region
    $region2: #{tpu_custom_call.1} parent=1 // pred_check
      _
    $region3: #{tpu_custom_call.1} parent=1 // pred_check_branch
      %14 = sbr.rel (0) target = $region5
    $region4: #{tpu_custom_call.1} parent=1 // pred_region
      _
    $region5: #{tpu_custom_call.1} parent=1 // pred_fallthru
      _
    // Predicated region
    $region6: #{tpu_custom_call.1} parent=1 // pred_check
      _
    $region7: #{tpu_custom_call.1} parent=1 // pred_check_branch
      %16 = sbr.rel (0) target = $region9
    $region8: #{tpu_custom_call.1} parent=1 // pred_region
      _
    $region9: #{tpu_custom_call.1} parent=1 // pred_fallthru
      _
    // Predicated region
    $region10: #{tpu_custom_call.1} parent=1 // pred_check
      _
    $region11: #{tpu_custom_call.1} parent=1 // pred_check_branch
      %18 = sbr.rel (0) target = $region13
    $region12: #{tpu_custom_call.1} parent=1 // pred_region
      _
    $region13: #{tpu_custom_call.1} parent=1 // pred_fallthru
      _
    // Predicated region
    $region14: #{tpu_custom_call.1} parent=1 // pred_check
      _
    $region15: #{tpu_custom_call.1} parent=1 // pred_check_branch
      %20 = sbr.rel (0) target = $region17
    $region16: #{tpu_custom_call.1} parent=1 // pred_region
      _
    $region17: #{tpu_custom_call.1} parent=1 // pred_fallthru
      _
    // Predicated region
    $region18: #{tpu_custom_call.1} parent=1 // pred_check
      _
    $region19: #{tpu_custom_call.1} parent=1 // pred_check_branch
      %22 = sbr.rel (0) target = $region21
    $region20: #{tpu_custom_call.1} parent=1 // pred_region
      %s24 = ssub.s32 2048, 2048
      %25 = vsyncadd [#allocation3], %s24
      %s26 = sshll.u32 [#allocation2], 4
      %s27 = int_to_ptr.vmem [resolvable:$true] %s26
      %32 = dma.hbm_to_vmem [thread:$0]  %s4, 2048, %s27, [#allocation3], 128, 128, 8
    $region21: #{tpu_custom_call.1} parent=1 // pred_fallthru
      _
    // Predicated region
    $region22: #{tpu_custom_call.1} parent=1 // pred_check
      _
    $region23: #{tpu_custom_call.1} parent=1 // pred_check_branch
      %34 = sbr.rel (0) target = $region25
    $region24: #{tpu_custom_call.1} parent=1 // pred_region
      _
    $region25: #{tpu_custom_call.1} parent=1 // pred_fallthru
      _
    // Predicated region
    $region26: #{tpu_custom_call.1} parent=1 // pred_check
      _
    $region27: #{tpu_custom_call.1} parent=1 // pred_check_branch
      %36 = sbr.rel (0) target = $region29
    $region28: #{tpu_custom_call.1} parent=1 // pred_region
      %37 = dma.done [#allocation3], 2048
    $region29: #{tpu_custom_call.1} parent=1 // pred_fallthru
      _
    %v38 = vld [vmem:[%s0] sm:$0xff]
    %v39 = vld [vmem:[%s1] sm:$0xff]
    %v40 = vld [vmem:[%s1 + $0x8] sm:$0xf]
    %v41 = vld [vmem:[%s2] sm:$0x7]
    %v43 = vlaneseq
    %v44 = vshrl.u32 %v43, 7
    %v45 = vsub.s32 0, %v44
    %v46 = vrot.slane %v41, %v45
    %v47 = vlaneseq
    %v48 = vshrl.u32 %v47, 7
    %v49 = vsub.s32 1, %v48
    %v50 = vrot.slane %v41, %v49
    %v51 = vlaneseq
    %v52 = vshrl.u32 %v51, 7
    %v53 = vsub.s32 2, %v52
    %v54 = vrot.slane %v41, %v53
    %v60 = vcombine.high %v39, %v39
    %vm61 = vcmask 31744
    %v63 = vsel %vm61, %v38, 0
    %vm65 = vcmask 1043456
    %v66 = vsel %vm65, %v39, 0
    %v68 = vsel %vm65, %v60, 0
    %v70 = vsel %vm65, %v40, 0
    %72 = vmatprep.subr.mxu0 %v68
    %73 = vmatpush1.msra.mxu0 %v66
    %74 = vmatprep.subr.mxu0 0.0
    %75 = vmatpush1.msra.mxu0 0.0
    %76 = vmatprep.subr.mxu0 0.0
    %77 = vmatpush1.msra.mxu0 0.0
    %78 = vmatprep.subr.mxu0 0.0
    %79 = vmatpush1.msra.mxu0 0.0
    %80 = vmatprep.subr.mxu0 0.0
    %81 = vmatpush1.msra.mxu0 0.0
    %82 = vmatprep.subr.mxu0 0.0
    %83 = vmatpush1.msra.mxu0 0.0
    %84 = vmatprep.subr.mxu0 0.0
    %85 = vmatpush1.msra.mxu0 0.0
    %86 = vmatprep.subr.mxu0 0.0
    %87 = vmatpush1.msra.mxu0 0.0
    %88 = vmatprep.subr.mxu0 0.0
    %89 = vmatpush1.msra.mxu0 0.0
    %90 = vmatprep.subr.mxu0 0.0
    %91 = vmatpush1.msra.mxu0 0.0
    %92 = vmatprep.subr.mxu0 0.0
    %93 = vmatpush1.msra.mxu0 0.0
    %94 = vmatprep.subr.mxu0 0.0
    %95 = vmatpush1.msra.mxu0 0.0
    %96 = vmatprep.subr.mxu0 0.0
    %97 = vmatpush1.msra.mxu0 0.0
    %98 = vmatprep.subr.mxu0 0.0
    %99 = vmatpush1.msra.mxu0 0.0
    %100 = vmatprep.subr.mxu0 0.0
    %101 = vmatpush1.msra.mxu0 0.0
    %102 = vmatprep.subr.mxu0 0.0
    %103 = vmatpush1.msra.mxu0 0.0
    %104 = vmatprep.subr.mxu0 0.0
    %105 = vmatpush1.msra.mxu0 0.0
    %106 = vmatprep.subr.mxu0 0.0
    %107 = vmatpush1.msra.mxu0 0.0
    %108 = vmatprep.subr.mxu0 0.0
    %109 = vmatpush1.msra.mxu0 0.0
    %110 = vmatprep.subr.mxu0 0.0
    %111 = vmatpush1.msra.mxu0 0.0
    %112 = vmatprep.subr.mxu0 0.0
    %113 = vmatpush1.msra.mxu0 0.0
    %114 = vmatprep.subr.mxu0 0.0
    %115 = vmatpush1.msra.mxu0 0.0
    %116 = vmatprep.subr.mxu0 0.0
    %117 = vmatpush1.msra.mxu0 0.0
    %118 = vmatprep.subr.mxu0 0.0
    %119 = vmatpush1.msra.mxu0 0.0
    %120 = vmatprep.subr.mxu0 0.0
    %121 = vmatpush1.msra.mxu0 0.0
    %122 = vmatprep.subr.mxu0 0.0
    %123 = vmatpush1.msra.mxu0 0.0
    %124 = vmatprep.subr.mxu0 0.0
    %125 = vmatpush1.msra.mxu0 0.0
    %126 = vmatprep.subr.mxu0 0.0
    %127 = vmatpush1.msra.mxu0 0.0
    %128 = vmatprep.subr.mxu0 0.0
    %129 = vmatpush1.msra.mxu0 0.0
    %130 = vmatprep.subr.mxu0 0.0
    %131 = vmatpush1.msra.mxu0 0.0
    %132 = vmatprep.subr.mxu0 0.0
    %133 = vmatpush1.msra.mxu0 0.0
    %134 = vmatprep.subr.mxu0 0.0
    %135 = vmatpush1.msra.mxu0 0.0
    %136 = vmatprep.mubr.f32.mxu0 0.0
    %137 = vmatmul.mubr.f32.gmra.mrb[0].mxu0 %v63
    %v138 = vpop.f32.mrb[0].mxu0
    %v139 = vadd.f32 %v46, %v138
    %v140 = vpop.f32.mrb[0].mxu0
    %v141 = vadd.f32 %v50, %v140
    %142 = vdwg.mxu0
    %143 = vmatprep.subr.mxu0 0.0
    %144 = vmatpush1.msra.mxu0 %v70
    %145 = vmatprep.subr.mxu0 0.0
    %146 = vmatpush1.msra.mxu0 0.0
    %147 = vmatprep.subr.mxu0 0.0
    %148 = vmatpush1.msra.mxu0 0.0
    %149 = vmatprep.subr.mxu0 0.0
    %150 = vmatpush1.msra.mxu0 0.0
    %151 = vmatprep.subr.mxu0 0.0
    %152 = vmatpush1.msra.mxu0 0.0
    %153 = vmatprep.subr.mxu0 0.0
    %154 = vmatpush1.msra.mxu0 0.0
    %155 = vmatprep.subr.mxu0 0.0
    %156 = vmatpush1.msra.mxu0 0.0
    %157 = vmatprep.subr.mxu0 0.0
    %158 = vmatpush1.msra.mxu0 0.0
    %159 = vmatprep.subr.mxu0 0.0
    %160 = vmatpush1.msra.mxu0 0.0
    %161 = vmatprep.subr.mxu0 0.0
    %162 = vmatpush1.msra.mxu0 0.0
    %163 = vmatprep.subr.mxu0 0.0
    %164 = vmatpush1.msra.mxu0 0.0
    %165 = vmatprep.subr.mxu0 0.0
    %166 = vmatpush1.msra.mxu0 0.0
    %167 = vmatprep.subr.mxu0 0.0
    %168 = vmatpush1.msra.mxu0 0.0
    %169 = vmatprep.subr.mxu0 0.0
    %170 = vmatpush1.msra.mxu0 0.0
    %171 = vmatprep.subr.mxu0 0.0
    %172 = vmatpush1.msra.mxu0 0.0
    %173 = vmatprep.subr.mxu0 0.0
    %174 = vmatpush1.msra.mxu0 0.0
    %175 = vmatprep.subr.mxu0 0.0
    %176 = vmatpush1.msra.mxu0 0.0
    %177 = vmatprep.subr.mxu0 0.0
    %178 = vmatpush1.msra.mxu0 0.0
    %179 = vmatprep.subr.mxu0 0.0
    %180 = vmatpush1.msra.mxu0 0.0
    %181 = vmatprep.subr.mxu0 0.0
    %182 = vmatpush1.msra.mxu0 0.0
    %183 = vmatprep.subr.mxu0 0.0
    %184 = vmatpush1.msra.mxu0 0.0
    %185 = vmatprep.subr.mxu0 0.0
    %186 = vmatpush1.msra.mxu0 0.0
    %187 = vmatprep.subr.mxu0 0.0
    %188 = vmatpush1.msra.mxu0 0.0
    %189 = vmatprep.subr.mxu0 0.0
    %190 = vmatpush1.msra.mxu0 0.0
    %191 = vmatprep.subr.mxu0 0.0
    %192 = vmatpush1.msra.mxu0 0.0
    %193 = vmatprep.subr.mxu0 0.0
    %194 = vmatpush1.msra.mxu0 0.0
    %195 = vmatprep.subr.mxu0 0.0
    %196 = vmatpush1.msra.mxu0 0.0
    %197 = vmatprep.subr.mxu0 0.0
    %198 = vmatpush1.msra.mxu0 0.0
    %199 = vmatprep.subr.mxu0 0.0
    %200 = vmatpush1.msra.mxu0 0.0
    %201 = vmatprep.subr.mxu0 0.0
    %202 = vmatpush1.msra.mxu0 0.0
    %203 = vmatprep.subr.mxu0 0.0
    %204 = vmatpush1.msra.mxu0 0.0
    %205 = vmatprep.subr.mxu0 0.0
    %206 = vmatpush1.msra.mxu0 0.0
    %207 = vmatprep.mubr.f32.mxu0 0.0
    %208 = vmatmul.mubr.f32.gmra.mrb[0].mxu0 %v63
    %v209 = vpop.f32.mrb[0].mxu0
    %v210 = vadd.f32 %v54, %v209
    %v211 = vpop.f32.mrb[0].mxu0
    %212 = vdwg.mxu0
    %v213 = vxor.u32 %v139, 2147483648
    %v214 = vmul.f32 %v213, 1.442695
    %v215 = vpow.pop %v214
    %v216 = vadd.f32 %v215, 1.0
    %v217 = vrcp.pop %v216
    %v218 = vmul.f32 1.0, %v217
    %v219 = vxor.u32 %v141, 2147483648
    %v220 = vmul.f32 %v219, 1.442695
    %v221 = vpow.pop %v220
    %v222 = vadd.f32 %v221, 1.0
    %v223 = vrcp.pop %v222
    %v224 = vmul.f32 1.0, %v223
    %v225 = vld [vmem:[%s3] sm:$0x1]
    %v227 = vlaneseq
    %v228 = vshrl.u32 %v227, 7
    %v229 = vsub.s32 0, %v228
    %v230 = vrot.slane %v225, %v229
    %v232 = vmul.f32 %v218, %v230
    %v233 = vadd.f32 %v210, %v232
    %v234 = vtanh.pop %v233
    %v235 = vsub.f32 1.0, %v224
    %v236 = vmul.f32 %v235, %v234
    %v237 = vld [vmem:[#allocation2] sm:$0xff]
    %v238 = vld [vmem:[#allocation2 + $0x8] sm:$0xff]
    %v239 = vld [vmem:[#allocation2 + $0x10] sm:$0xff]
    %v240 = vld [vmem:[#allocation2 + $0x18] sm:$0xff]
    %v241 = vld [vmem:[#allocation2 + $0x20] sm:$0xff]
    %v242 = vld [vmem:[#allocation2 + $0x28] sm:$0xff]
    %v243 = vld [vmem:[#allocation2 + $0x30] sm:$0xff]
    %v244 = vld [vmem:[#allocation2 + $0x38] sm:$0xff]
    %v245 = vld [vmem:[#allocation2 + $0x40] sm:$0xff]
    %v246 = vld [vmem:[#allocation2 + $0x48] sm:$0xff]
    %v247 = vld [vmem:[#allocation2 + $0x50] sm:$0xff]
    %v248 = vld [vmem:[#allocation2 + $0x58] sm:$0xff]
    %v249 = vld [vmem:[#allocation2 + $0x60] sm:$0xff]
    %v250 = vld [vmem:[#allocation2 + $0x68] sm:$0xff]
    %v251 = vld [vmem:[#allocation2 + $0x70] sm:$0xff]
    %v252 = vld [vmem:[#allocation2 + $0x78] sm:$0xff]
    %v253 = vld [vmem:[%s5] sm:$0x1]
    %v255 = vlaneseq
    %v256 = vshrl.u32 %v255, 7
    %v257 = vsub.s32 0, %v256
    %v258 = vrot.slane %v253, %v257
    %260 = vmatprep.subr.mxu0 0.0
    %261 = vmatpush1.msra.mxu0 %v237
    %262 = vmatprep.subr.mxu0 0.0
    %263 = vmatpush1.msra.mxu0 %v238
    %264 = vmatprep.subr.mxu0 0.0
    %265 = vmatpush1.msra.mxu0 %v239
    %266 = vmatprep.subr.mxu0 0.0
    %267 = vmatpush1.msra.mxu0 %v240
    %268 = vmatprep.subr.mxu0 0.0
    %269 = vmatpush1.msra.mxu0 %v241
    %270 = vmatprep.subr.mxu0 0.0
    %271 = vmatpush1.msra.mxu0 %v242
    %272 = vmatprep.subr.mxu0 0.0
    %273 = vmatpush1.msra.mxu0 %v243
    %274 = vmatprep.subr.mxu0 0.0
    %275 = vmatpush1.msra.mxu0 %v244
    %276 = vmatprep.subr.mxu0 0.0
    %277 = vmatpush1.msra.mxu0 %v245
    %278 = vmatprep.subr.mxu0 0.0
    %279 = vmatpush1.msra.mxu0 %v246
    %280 = vmatprep.subr.mxu0 0.0
    %281 = vmatpush1.msra.mxu0 %v247
    %282 = vmatprep.subr.mxu0 0.0
    %283 = vmatpush1.msra.mxu0 %v248
    %284 = vmatprep.subr.mxu0 0.0
    %285 = vmatpush1.msra.mxu0 %v249
    %286 = vmatprep.subr.mxu0 0.0
    %287 = vmatpush1.msra.mxu0 %v250
    %288 = vmatprep.subr.mxu0 0.0
    %289 = vmatpush1.msra.mxu0 %v251
    %290 = vmatprep.subr.mxu0 0.0
    %291 = vmatpush1.msra.mxu0 %v252
    %292 = vmatprep.subr.mxu0 0.0
    %293 = vmatpush1.msra.mxu0 0.0
    %294 = vmatprep.subr.mxu0 0.0
    %295 = vmatpush1.msra.mxu0 0.0
    %296 = vmatprep.subr.mxu0 0.0
    %297 = vmatpush1.msra.mxu0 0.0
    %298 = vmatprep.subr.mxu0 0.0
    %299 = vmatpush1.msra.mxu0 0.0
    %300 = vmatprep.subr.mxu0 0.0
    %301 = vmatpush1.msra.mxu0 0.0
    %302 = vmatprep.subr.mxu0 0.0
    %303 = vmatpush1.msra.mxu0 0.0
    %304 = vmatprep.subr.mxu0 0.0
    %305 = vmatpush1.msra.mxu0 0.0
    %306 = vmatprep.subr.mxu0 0.0
    %307 = vmatpush1.msra.mxu0 0.0
    %308 = vmatprep.subr.mxu0 0.0
    %309 = vmatpush1.msra.mxu0 0.0
    %310 = vmatprep.subr.mxu0 0.0
    %311 = vmatpush1.msra.mxu0 0.0
    %312 = vmatprep.subr.mxu0 0.0
    %313 = vmatpush1.msra.mxu0 0.0
    %314 = vmatprep.subr.mxu0 0.0
    %315 = vmatpush1.msra.mxu0 0.0
    %316 = vmatprep.subr.mxu0 0.0
    %317 = vmatpush1.msra.mxu0 0.0
    %318 = vmatprep.subr.mxu0 0.0
    %319 = vmatpush1.msra.mxu0 0.0
    %320 = vmatprep.subr.mxu0 0.0
    %321 = vmatpush1.msra.mxu0 0.0
    %322 = vmatprep.subr.mxu0 0.0
    %323 = vmatpush1.msra.mxu0 0.0
    %324 = vmatprep.mubr.f32.mxu0 0.0
    %325 = vmatmul.mubr.f32.gmra.mrb[0].mxu0 %v236
    %v326 = vpop.f32.mrb[0].mxu0
    %v327 = vadd.f32 %v258, %v326
    %v328 = vpop.f32.mrb[0].mxu0
    %329 = vdwg.mxu0
    %v330 = vxor.u32 %v327, 2147483648
    %v331 = vmul.f32 %v330, 1.442695
    %v332 = vpow.pop %v331
    %v333 = vadd.f32 %v332, 1.0
    %v334 = vrcp.pop %v333
    %v335 = vmul.f32 1.0, %v334
    %v336 = vlaneseq
    %v337 = vand.u32 %v336, 127
    %vm338 = vcmp.ge.s32.totalorder %v337, 34
    %vm339 = vcmp.lt.s32.totalorder %v337, 36
    %vm340 = vmand %vm338, %vm339
    %v341 = vadd.f32 %v236, %v327
    %v342 = vsel %vm340, 1, 0
    %vm343 = vcmp.eq.s32.totalorder %v342, 1
    %v344 = vsel %vm343, %v335, %v341
    %345 = vst [vmem:[#allocation5] sm:$0xff] %v344
    // Predicated region
    $region30: #{tpu_custom_call.1} parent=1 // pred_check
      _
    $region31: #{tpu_custom_call.1} parent=1 // pred_check_branch
      %347 = sbr.rel (0) target = $region33
    $region32: #{tpu_custom_call.1} parent=1 // pred_region
      %s349 = ssub.s32 128, 128
      %350 = vsyncadd [#allocation4], %s349
      %s352 = sshll.u32 [#allocation5], 4
      %s353 = int_to_ptr.vmem [resolvable:$true] %s352
      %355 = dma.vmem_to_hbm [thread:$0]  %s353, 128, %s6, [#allocation4]
    $region33: #{tpu_custom_call.1} parent=1 // pred_fallthru
      _
    // Predicated region
    $region34: #{tpu_custom_call.1} parent=1 // pred_check
      _
    $region35: #{tpu_custom_call.1} parent=1 // pred_check_branch
      %357 = sbr.rel (0) target = $region37
    $region36: #{tpu_custom_call.1} parent=1 // pred_region
      %358 = dma.done [#allocation4], 128
    $region37: #{tpu_custom_call.1} parent=1 // pred_fallthru
      _
    %359 = vsyncpa [#allocation3], 1
    %360 = vsyncpa [#allocation4], 1

</llo_original>
